<compile_context>
chip_gen: v5e
topology: v5e:2x2
jax: 0.10.0
libtpu: 0.0.40
codegen_flags: <defaults>
</compile_context>

<pallas_src>
import math
import functools

import jax
import jax.numpy as jnp
from jax import lax
from jax.experimental import pallas as pl
from jax.experimental.pallas import tpu as pltpu


def _attention_kernel(xq_ref, xk_ref, xv_ref,
                      wq_ref, wk_ref, wv_ref, wo_ref,
                      o_ref, *, num_heads, head_dim, scale):
    """One grid step == one batch element; all heads computed in-body."""
    x_q = xq_ref[0]           # (S, E)
    x_k = xk_ref[0]
    x_v = xv_ref[0]

    # Full-width projections: (S, E) @ (E, E) -- one E-wide MXU contraction
    # per input instead of H tiny (E, D) ones.
    q = jnp.dot(x_q, wq_ref[...], preferred_element_type=jnp.float32)
    k = jnp.dot(x_k, wk_ref[...], preferred_element_type=jnp.float32)
    v = jnp.dot(x_v, wv_ref[...], preferred_element_type=jnp.float32)

    ctx_heads = []
    for h in range(num_heads):          # static unroll; H is small
        lo = h * head_dim
        hi = lo + head_dim
        qh = q[:, lo:hi]                # (S, D) static lane slices
        kh = k[:, lo:hi]
        vh = v[:, lo:hi]

        # Q K^T with K consumed untransposed: contract the last dims directly.
        s = lax.dot_general(
            qh, kh, dimension_numbers=(((1,), (1,)), ((), ())),
            preferred_element_type=jnp.float32) * scale

        # Online-style softmax normalization moved AFTER the PV matmul:
        # the reciprocal touches (S,1) and the multiply (S,D), not (S,S).
        m = jnp.max(s, axis=-1, keepdims=True)
        p = jnp.exp(s - m)
        l = jnp.sum(p, axis=-1, keepdims=True)
        ctx = jnp.dot(p, vh, preferred_element_type=jnp.float32)   # (S, D)
        ctx = ctx * pl.reciprocal(l)    # exact; approx=True would relax tol
        ctx_heads.append(ctx)

    # Concat heads -> (S, E); single full-E contraction for the output proj.
    ctx_all = jnp.concatenate(ctx_heads, axis=-1)
    out = jnp.dot(ctx_all, wo_ref[...], preferred_element_type=jnp.float32)
    o_ref[0] = out.astype(o_ref.dtype)


def attention_pallas(xq, xk, xv, Wq, Wk, Wv, Wo, num_heads):
    """xq/xk/xv: (B, S, E) float32.  W*: (E, E) PyTorch Linear weights (out, in)."""
    B, S, E = xq.shape
    H = num_heads
    assert E % H == 0, "embedding size not divisible by number of heads"
    D = E // H
    scale = 1.0 / math.sqrt(D)

    # Pre-transpose once in the wrapper so the kernel does x @ W^T as a plain
    # (S, E) @ (E, E) matmul with lane dim = E (no per-head lane-sparse weight
    # tiles, no in-kernel weight transposes).
    wq_t = Wq.T        # (E_in, E_out)
    wk_t = Wk.T
    wv_t = Wv.T
    wo_t = Wo.T        # rows index the concatenated-head features

    kernel = functools.partial(_attention_kernel,
                               num_heads=H, head_dim=D, scale=scale)

    grid_spec = pltpu.PrefetchScalarGridSpec(
        num_scalar_prefetch=0,
        grid=(B,),
        in_specs=[
            pl.BlockSpec((1, S, E), lambda b: (b, 0, 0)),   # xq
            pl.BlockSpec((1, S, E), lambda b: (b, 0, 0)),   # xk
            pl.BlockSpec((1, S, E), lambda b: (b, 0, 0)),   # xv
            pl.BlockSpec((E, E), lambda b: (0, 0)),         # Wq^T (VMEM-resident)
            pl.BlockSpec((E, E), lambda b: (0, 0)),         # Wk^T
            pl.BlockSpec((E, E), lambda b: (0, 0)),         # Wv^T
            pl.BlockSpec((E, E), lambda b: (0, 0)),         # Wo^T
        ],
        out_specs=pl.BlockSpec((1, S, E), lambda b: (b, 0, 0)),
    )

    # TODO(synk): at production sizes (large S / E) switch to flash-style KV
    # tiling (online softmax, tq/tk ~256) so the (S,S) score tile and the
    # (S,E) input blocks fit v7x's 64 MiB VMEM; with E >= 128 the output tile
    # also becomes lane-dense automatically (E=32 here means masked partial
    # stores, acceptable only at toy scale). Fold multiple batch elements per
    # grid step (Bt > 1) when B is large to amortize per-step overhead.
    return pl.pallas_call(
        kernel,
        grid_spec=grid_spec,
        out_shape=jax.ShapeDtypeStruct((B, S, E), xq.dtype),
        compiler_params=pltpu.CompilerParams(
            dimension_semantics=("parallel",)),
    )(xq, xk, xv, wq_t, wk_t, wv_t, wo_t)


def attention_reference(xq, xk, xv, Wq, Wk, Wv, Wo, num_heads):
    """Pure-JAX reference mirroring the PyTorch forward (eval mode)."""
    B, S, E = xq.shape
    H = num_heads
    D = E // H
    q = (xq @ Wq.T).reshape(B, S, H, D).transpose(0, 2, 1, 3)
    k = (xk @ Wk.T).reshape(B, S, H, D).transpose(0, 2, 1, 3)
    v = (xv @ Wv.T).reshape(B, S, H, D).transpose(0, 2, 1, 3)
    scores = jnp.einsum("bhsd,bhtd->bhst", q, k) / math.sqrt(D)
    probs = jax.nn.softmax(scores, axis=-1)
    ctx = jnp.einsum("bhst,bhtd->bhsd", probs, v)
    ctx = ctx.transpose(0, 2, 1, 3).reshape(B, S, E)
    return ctx @ Wo.T


if __name__ == "__main__":
    B, S, E, H = 2, 8, 32, 4

    key = jax.random.PRNGKey(0)
    k_xq, k_xk, k_xv, k_wq, k_wk, k_wv, k_wo = jax.random.split(key, 7)

    xq = jax.random.normal(k_xq, (B, S, E), dtype=jnp.float32)
    xk = jax.random.normal(k_xk, (B, S, E), dtype=jnp.float32)
    xv = jax.random.normal(k_xv, (B, S, E), dtype=jnp.float32)

    # Deterministic weight init (matches torch.nn.Linear's U(-1/sqrt(in), 1/sqrt(in)) range).
    bound = 1.0 / math.sqrt(E)
    Wq = jax.random.uniform(k_wq, (E, E), minval=-bound, maxval=bound, dtype=jnp.float32)
    Wk = jax.random.uniform(k_wk, (E, E), minval=-bound, maxval=bound, dtype=jnp.float32)
    Wv = jax.random.uniform(k_wv, (E, E), minval=-bound, maxval=bound, dtype=jnp.float32)
    Wo = jax.random.uniform(k_wo, (E, E), minval=-bound, maxval=bound, dtype=jnp.float32)

    out = attention_pallas(xq, xk, xv, Wq, Wk, Wv, Wo, num_heads=H)
    out = jax.block_until_ready(out)

    ref = attention_reference(xq, xk, xv, Wq, Wk, Wv, Wo, num_heads=H)
    assert out.shape == (B, S, E)
    assert jnp.allclose(out, ref, atol=1e-5, rtol=1e-5), (
        f"max err {jnp.max(jnp.abs(out - ref))}")

    print("KERNEL_OK")
</pallas_src>

<mosaic_0001>
module attributes {stable_mosaic.version = 11 : i64} {
  func.func @_attention_kernel(%arg0: i32, %arg1: memref<1x8x32xf32, #tpu.memory_space<vmem>>, %arg2: memref<1x8x32xf32, #tpu.memory_space<vmem>>, %arg3: memref<1x8x32xf32, #tpu.memory_space<vmem>>, %arg4: memref<32x32xf32, #tpu.memory_space<vmem>>, %arg5: memref<32x32xf32, #tpu.memory_space<vmem>>, %arg6: memref<32x32xf32, #tpu.memory_space<vmem>>, %arg7: memref<32x32xf32, #tpu.memory_space<vmem>>, %arg8: memref<1x8x32xf32, #tpu.memory_space<vmem>>) attributes {dimension_semantics = [#tpu.dimension_semantics<parallel>], iteration_bounds = array<i64: 2>, scalar_prefetch = 0 : i64, scratch_operands = 0 : i64, tpu.core_type = #tpu.core_type<tc>, window_params = [{transform_indices = @transform_0, window_bounds = array<i64: 1, 8, 32>}, {transform_indices = @transform_1, window_bounds = array<i64: 1, 8, 32>}, {transform_indices = @transform_2, window_bounds = array<i64: 1, 8, 32>}, {pipeline_mode = #tpu.pipeline_mode<synchronous>, transform_indices = @transform_3, window_bounds = array<i64: 32, 32>}, {pipeline_mode = #tpu.pipeline_mode<synchronous>, transform_indices = @transform_4, window_bounds = array<i64: 32, 32>}, {pipeline_mode = #tpu.pipeline_mode<synchronous>, transform_indices = @transform_5, window_bounds = array<i64: 32, 32>}, {pipeline_mode = #tpu.pipeline_mode<synchronous>, transform_indices = @transform_6, window_bounds = array<i64: 32, 32>}, {transform_indices = @transform_7, window_bounds = array<i64: 1, 8, 32>}]} {
    %c0 = arith.constant 0 : index
    %c0_0 = arith.constant 0 : index
    %c0_1 = arith.constant 0 : index
    %0 = vector.load %arg1[%c0, %c0_0, %c0_1] : memref<1x8x32xf32, #tpu.memory_space<vmem>>, vector<1x8x32xf32>
    %1 = vector.shape_cast %0 : vector<1x8x32xf32> to vector<8x32xf32>
    %c0_2 = arith.constant 0 : index
    %c0_3 = arith.constant 0 : index
    %c0_4 = arith.constant 0 : index
    %2 = vector.load %arg2[%c0_2, %c0_3, %c0_4] : memref<1x8x32xf32, #tpu.memory_space<vmem>>, vector<1x8x32xf32>
    %3 = vector.shape_cast %2 : vector<1x8x32xf32> to vector<8x32xf32>
    %c0_5 = arith.constant 0 : index
    %c0_6 = arith.constant 0 : index
    %c0_7 = arith.constant 0 : index
    %4 = vector.load %arg3[%c0_5, %c0_6, %c0_7] : memref<1x8x32xf32, #tpu.memory_space<vmem>>, vector<1x8x32xf32>
    %5 = vector.shape_cast %4 : vector<1x8x32xf32> to vector<8x32xf32>
    %c0_8 = arith.constant 0 : index
    %c0_9 = arith.constant 0 : index
    %6 = vector.load %arg4[%c0_8, %c0_9] : memref<32x32xf32, #tpu.memory_space<vmem>>, vector<32x32xf32>
    %cst = arith.constant dense<0.000000e+00> : vector<8x32xf32>
    %7 = tpu.matmul %1, %6, %cst {dimension_numbers = #tpu.dot_dimension_numbers<[1], [0], [0], [1], [0, 0, 1, 1], [], []>} : vector<8x32xf32>, vector<32x32xf32>, vector<8x32xf32> -> vector<8x32xf32>
    %c0_10 = arith.constant 0 : index
    %c0_11 = arith.constant 0 : index
    %8 = vector.load %arg5[%c0_10, %c0_11] : memref<32x32xf32, #tpu.memory_space<vmem>>, vector<32x32xf32>
    %cst_12 = arith.constant dense<0.000000e+00> : vector<8x32xf32>
    %9 = tpu.matmul %3, %8, %cst_12 {dimension_numbers = #tpu.dot_dimension_numbers<[1], [0], [0], [1], [0, 0, 1, 1], [], []>} : vector<8x32xf32>, vector<32x32xf32>, vector<8x32xf32> -> vector<8x32xf32>
    %c0_13 = arith.constant 0 : index
    %c0_14 = arith.constant 0 : index
    %10 = vector.load %arg6[%c0_13, %c0_14] : memref<32x32xf32, #tpu.memory_space<vmem>>, vector<32x32xf32>
    %cst_15 = arith.constant dense<0.000000e+00> : vector<8x32xf32>
    %11 = tpu.matmul %5, %10, %cst_15 {dimension_numbers = #tpu.dot_dimension_numbers<[1], [0], [0], [1], [0, 0, 1, 1], [], []>} : vector<8x32xf32>, vector<32x32xf32>, vector<8x32xf32> -> vector<8x32xf32>
    %12 = vector.extract_strided_slice %7 {offsets = [0, 0], sizes = [8, 8], strides = [1, 1]} : vector<8x32xf32> to vector<8x8xf32>
    %13 = vector.extract_strided_slice %9 {offsets = [0, 0], sizes = [8, 8], strides = [1, 1]} : vector<8x32xf32> to vector<8x8xf32>
    %14 = vector.extract_strided_slice %11 {offsets = [0, 0], sizes = [8, 8], strides = [1, 1]} : vector<8x32xf32> to vector<8x8xf32>
    %cst_16 = arith.constant dense<0.000000e+00> : vector<8x8xf32>
    %15 = tpu.matmul %12, %13, %cst_16 {dimension_numbers = #tpu.dot_dimension_numbers<[1], [1], [0], [0], [0, 0, 1, 0], [], []>} : vector<8x8xf32>, vector<8x8xf32>, vector<8x8xf32> -> vector<8x8xf32>
    %cst_17 = arith.constant 0.353553385 : f32
    %16 = vector.broadcast %cst_17 : f32 to vector<8x8xf32>
    %17 = arith.mulf %15, %16 : vector<8x8xf32>
    %cst_18 = arith.constant dense<0xFF800000> : vector<8xf32>
    %18 = vector.multi_reduction <maximumf>, %17, %cst_18 [1] : vector<8x8xf32> to vector<8xf32>
    %19 = vector.shape_cast %18 : vector<8xf32> to vector<8x1xf32>
    %20 = vector.broadcast %19 : vector<8x1xf32> to vector<8x8xf32>
    %21 = arith.subf %17, %20 : vector<8x8xf32>
    %22 = math.exp %21 : vector<8x8xf32>
    %cst_19 = arith.constant dense<0.000000e+00> : vector<8xf32>
    %23 = vector.multi_reduction <add>, %22, %cst_19 [1] : vector<8x8xf32> to vector<8xf32>
    %24 = vector.shape_cast %23 : vector<8xf32> to vector<8x1xf32>
    %cst_20 = arith.constant dense<0.000000e+00> : vector<8x8xf32>
    %25 = tpu.matmul %22, %14, %cst_20 {dimension_numbers = #tpu.dot_dimension_numbers<[1], [0], [0], [1], [0, 0, 1, 1], [], []>} : vector<8x8xf32>, vector<8x8xf32>, vector<8x8xf32> -> vector<8x8xf32>
    %26 = tpu.reciprocal %24 : vector<8x1xf32> -> vector<8x1xf32>
    %27 = vector.broadcast %26 : vector<8x1xf32> to vector<8x8xf32>
    %28 = arith.mulf %25, %27 : vector<8x8xf32>
    %29 = vector.extract_strided_slice %7 {offsets = [0, 8], sizes = [8, 8], strides = [1, 1]} : vector<8x32xf32> to vector<8x8xf32>
    %30 = vector.extract_strided_slice %9 {offsets = [0, 8], sizes = [8, 8], strides = [1, 1]} : vector<8x32xf32> to vector<8x8xf32>
    %31 = vector.extract_strided_slice %11 {offsets = [0, 8], sizes = [8, 8], strides = [1, 1]} : vector<8x32xf32> to vector<8x8xf32>
    %cst_21 = arith.constant dense<0.000000e+00> : vector<8x8xf32>
    %32 = tpu.matmul %29, %30, %cst_21 {dimension_numbers = #tpu.dot_dimension_numbers<[1], [1], [0], [0], [0, 0, 1, 0], [], []>} : vector<8x8xf32>, vector<8x8xf32>, vector<8x8xf32> -> vector<8x8xf32>
    %cst_22 = arith.constant 0.353553385 : f32
    %33 = vector.broadcast %cst_22 : f32 to vector<8x8xf32>
    %34 = arith.mulf %32, %33 : vector<8x8xf32>
    %cst_23 = arith.constant dense<0xFF800000> : vector<8xf32>
    %35 = vector.multi_reduction <maximumf>, %34, %cst_23 [1] : vector<8x8xf32> to vector<8xf32>
    %36 = vector.shape_cast %35 : vector<8xf32> to vector<8x1xf32>
    %37 = vector.broadcast %36 : vector<8x1xf32> to vector<8x8xf32>
    %38 = arith.subf %34, %37 : vector<8x8xf32>
    %39 = math.exp %38 : vector<8x8xf32>
    %cst_24 = arith.constant dense<0.000000e+00> : vector<8xf32>
    %40 = vector.multi_reduction <add>, %39, %cst_24 [1] : vector<8x8xf32> to vector<8xf32>
    %41 = vector.shape_cast %40 : vector<8xf32> to vector<8x1xf32>
    %cst_25 = arith.constant dense<0.000000e+00> : vector<8x8xf32>
    %42 = tpu.matmul %39, %31, %cst_25 {dimension_numbers = #tpu.dot_dimension_numbers<[1], [0], [0], [1], [0, 0, 1, 1], [], []>} : vector<8x8xf32>, vector<8x8xf32>, vector<8x8xf32> -> vector<8x8xf32>
    %43 = tpu.reciprocal %41 : vector<8x1xf32> -> vector<8x1xf32>
    %44 = vector.broadcast %43 : vector<8x1xf32> to vector<8x8xf32>
    %45 = arith.mulf %42, %44 : vector<8x8xf32>
    %46 = vector.extract_strided_slice %7 {offsets = [0, 16], sizes = [8, 8], strides = [1, 1]} : vector<8x32xf32> to vector<8x8xf32>
    %47 = vector.extract_strided_slice %9 {offsets = [0, 16], sizes = [8, 8], strides = [1, 1]} : vector<8x32xf32> to vector<8x8xf32>
    %48 = vector.extract_strided_slice %11 {offsets = [0, 16], sizes = [8, 8], strides = [1, 1]} : vector<8x32xf32> to vector<8x8xf32>
    %cst_26 = arith.constant dense<0.000000e+00> : vector<8x8xf32>
    %49 = tpu.matmul %46, %47, %cst_26 {dimension_numbers = #tpu.dot_dimension_numbers<[1], [1], [0], [0], [0, 0, 1, 0], [], []>} : vector<8x8xf32>, vector<8x8xf32>, vector<8x8xf32> -> vector<8x8xf32>
    %cst_27 = arith.constant 0.353553385 : f32
    %50 = vector.broadcast %cst_27 : f32 to vector<8x8xf32>
    %51 = arith.mulf %49, %50 : vector<8x8xf32>
    %cst_28 = arith.constant dense<0xFF800000> : vector<8xf32>
    %52 = vector.multi_reduction <maximumf>, %51, %cst_28 [1] : vector<8x8xf32> to vector<8xf32>
    %53 = vector.shape_cast %52 : vector<8xf32> to vector<8x1xf32>
    %54 = vector.broadcast %53 : vector<8x1xf32> to vector<8x8xf32>
    %55 = arith.subf %51, %54 : vector<8x8xf32>
    %56 = math.exp %55 : vector<8x8xf32>
    %cst_29 = arith.constant dense<0.000000e+00> : vector<8xf32>
    %57 = vector.multi_reduction <add>, %56, %cst_29 [1] : vector<8x8xf32> to vector<8xf32>
    %58 = vector.shape_cast %57 : vector<8xf32> to vector<8x1xf32>
    %cst_30 = arith.constant dense<0.000000e+00> : vector<8x8xf32>
    %59 = tpu.matmul %56, %48, %cst_30 {dimension_numbers = #tpu.dot_dimension_numbers<[1], [0], [0], [1], [0, 0, 1, 1], [], []>} : vector<8x8xf32>, vector<8x8xf32>, vector<8x8xf32> -> vector<8x8xf32>
    %60 = tpu.reciprocal %58 : vector<8x1xf32> -> vector<8x1xf32>
    %61 = vector.broadcast %60 : vector<8x1xf32> to vector<8x8xf32>
    %62 = arith.mulf %59, %61 : vector<8x8xf32>
    %63 = vector.extract_strided_slice %7 {offsets = [0, 24], sizes = [8, 8], strides = [1, 1]} : vector<8x32xf32> to vector<8x8xf32>
    %64 = vector.extract_strided_slice %9 {offsets = [0, 24], sizes = [8, 8], strides = [1, 1]} : vector<8x32xf32> to vector<8x8xf32>
    %65 = vector.extract_strided_slice %11 {offsets = [0, 24], sizes = [8, 8], strides = [1, 1]} : vector<8x32xf32> to vector<8x8xf32>
    %cst_31 = arith.constant dense<0.000000e+00> : vector<8x8xf32>
    %66 = tpu.matmul %63, %64, %cst_31 {dimension_numbers = #tpu.dot_dimension_numbers<[1], [1], [0], [0], [0, 0, 1, 0], [], []>} : vector<8x8xf32>, vector<8x8xf32>, vector<8x8xf32> -> vector<8x8xf32>
    %cst_32 = arith.constant 0.353553385 : f32
    %67 = vector.broadcast %cst_32 : f32 to vector<8x8xf32>
    %68 = arith.mulf %66, %67 : vector<8x8xf32>
    %cst_33 = arith.constant dense<0xFF800000> : vector<8xf32>
    %69 = vector.multi_reduction <maximumf>, %68, %cst_33 [1] : vector<8x8xf32> to vector<8xf32>
    %70 = vector.shape_cast %69 : vector<8xf32> to vector<8x1xf32>
    %71 = vector.broadcast %70 : vector<8x1xf32> to vector<8x8xf32>
    %72 = arith.subf %68, %71 : vector<8x8xf32>
    %73 = math.exp %72 : vector<8x8xf32>
    %cst_34 = arith.constant dense<0.000000e+00> : vector<8xf32>
    %74 = vector.multi_reduction <add>, %73, %cst_34 [1] : vector<8x8xf32> to vector<8xf32>
    %75 = vector.shape_cast %74 : vector<8xf32> to vector<8x1xf32>
    %cst_35 = arith.constant dense<0.000000e+00> : vector<8x8xf32>
    %76 = tpu.matmul %73, %65, %cst_35 {dimension_numbers = #tpu.dot_dimension_numbers<[1], [0], [0], [1], [0, 0, 1, 1], [], []>} : vector<8x8xf32>, vector<8x8xf32>, vector<8x8xf32> -> vector<8x8xf32>
    %77 = tpu.reciprocal %75 : vector<8x1xf32> -> vector<8x1xf32>
    %78 = vector.broadcast %77 : vector<8x1xf32> to vector<8x8xf32>
    %79 = arith.mulf %76, %78 : vector<8x8xf32>
    %80 = tpu.concatenate %28, %45, %62, %79 in 1 : vector<8x8xf32>, vector<8x8xf32>, vector<8x8xf32>, vector<8x8xf32> -> vector<8x32xf32>
    %c0_36 = arith.constant 0 : index
    %c0_37 = arith.constant 0 : index
    %81 = vector.load %arg7[%c0_36, %c0_37] : memref<32x32xf32, #tpu.memory_space<vmem>>, vector<32x32xf32>
    %cst_38 = arith.constant dense<0.000000e+00> : vector<8x32xf32>
    %82 = tpu.matmul %80, %81, %cst_38 {dimension_numbers = #tpu.dot_dimension_numbers<[1], [0], [0], [1], [0, 0, 1, 1], [], []>} : vector<8x32xf32>, vector<32x32xf32>, vector<8x32xf32> -> vector<8x32xf32>
    %c0_39 = arith.constant 0 : index
    %c0_40 = arith.constant 0 : index
    %c0_41 = arith.constant 0 : index
    %83 = vector.load %arg8[%c0_39, %c0_40, %c0_41] : memref<1x8x32xf32, #tpu.memory_space<vmem>>, vector<1x8x32xf32>
    %84 = vector.shape_cast %83 : vector<1x8x32xf32> to vector<8x32xf32>
    %85 = vector.shape_cast %82 : vector<8x32xf32> to vector<1x8x32xf32>
    tpu.vector_store %arg8[%c0_39, %c0_40, %c0_41], %85 {strides = array<i32>} : memref<1x8x32xf32, #tpu.memory_space<vmem>>, vector<1x8x32xf32>,
    return
  }
  func.func @transform_0(%arg0: i32) -> (i32, i32, i32) {
    %c0_i32 = arith.constant 0 : i32
    %c0_i32_0 = arith.constant 0 : i32
    %c0_i32_1 = arith.constant 0 : i32
    return %arg0, %c0_i32, %c0_i32_0 : i32, i32, i32
  }
  func.func @transform_1(%arg0: i32) -> (i32, i32, i32) {
    %c0_i32 = arith.constant 0 : i32
    %c0_i32_0 = arith.constant 0 : i32
    %c0_i32_1 = arith.constant 0 : i32
    return %arg0, %c0_i32, %c0_i32_0 : i32, i32, i32
  }
  func.func @transform_2(%arg0: i32) -> (i32, i32, i32) {
    %c0_i32 = arith.constant 0 : i32
    %c0_i32_0 = arith.constant 0 : i32
    %c0_i32_1 = arith.constant 0 : i32
    return %arg0, %c0_i32, %c0_i32_0 : i32, i32, i32
  }
  func.func @transform_3(%arg0: i32) -> (i32, i32) {
    %c0_i32 = arith.constant 0 : i32
    %c0_i32_0 = arith.constant 0 : i32
    %c0_i32_1 = arith.constant 0 : i32
    return %c0_i32, %c0_i32_0 : i32, i32
  }
  func.func @transform_4(%arg0: i32) -> (i32, i32) {
    %c0_i32 = arith.constant 0 : i32
    %c0_i32_0 = arith.constant 0 : i32
    %c0_i32_1 = arith.constant 0 : i32
    return %c0_i32, %c0_i32_0 : i32, i32
  }
  func.func @transform_5(%arg0: i32) -> (i32, i32) {
    %c0_i32 = arith.constant 0 : i32
    %c0_i32_0 = arith.constant 0 : i32
    %c0_i32_1 = arith.constant 0 : i32
    return %c0_i32, %c0_i32_0 : i32, i32
  }
  func.func @transform_6(%arg0: i32) -> (i32, i32) {
    %c0_i32 = arith.constant 0 : i32
    %c0_i32_0 = arith.constant 0 : i32
    %c0_i32_1 = arith.constant 0 : i32
    return %c0_i32, %c0_i32_0 : i32, i32
  }
  func.func @transform_7(%arg0: i32) -> (i32, i32, i32) {
    %c0_i32 = arith.constant 0 : i32
    %c0_i32_0 = arith.constant 0 : i32
    %c0_i32_1 = arith.constant 0 : i32
    return %arg0, %c0_i32, %c0_i32_0 : i32, i32, i32
  }
}

</mosaic_0001>

<llo_original>
// kernel: tpu_custom_call.1
$region0: #{tpu_custom_call.1}
  #allocation0 [shape = 'u32[]', space=smem, size = 0x4, offset = 0x4, fixed_abs, tag = 'smem constant byte address 0x4 - core index']
  #allocation1 [shape = 'u32[72,128]{1,0:T(1,128)}', space=vmem, size = 0x9000, scoped, tag = 'internal scratch']
  %s0 = inlined_call_operand.hbm [shape: f32[2,8,32], index: 0, kind: input, shape index: {}]
  %s1 = inlined_call_operand.hbm [shape: f32[2,8,32], index: 1, kind: input, shape index: {}]
  %s2 = inlined_call_operand.hbm [shape: f32[2,8,32], index: 2, kind: input, shape index: {}]
  %s3 = inlined_call_operand.hbm [shape: f32[32,32], index: 3, kind: input, shape index: {}]
  %s4 = inlined_call_operand.hbm [shape: f32[32,32], index: 4, kind: input, shape index: {}]
  %s5 = inlined_call_operand.hbm [shape: f32[32,32], index: 5, kind: input, shape index: {}]
  %s6 = inlined_call_operand.hbm [shape: f32[32,32], index: 6, kind: input, shape index: {}]
  %s7 = inlined_call_operand.hbm [shape: f32[2,8,32], index: 7, kind: output, shape index: {}]
  %s8 = sld [smem:[#allocation0]]
  $region89: #{tpu_custom_call.1} parent=0
    _
  %s10 = ssub.s32 1, %s8
  %s11 = scalar_select 0, %s10, %s8
  $region1: #{tpu_custom_call.1} parent=0
    #allocation2 [shape = 'u8[8192]{0}', space=vmem, size = 0x2000, scoped, tag = 'input window, operand 0']
    #allocation3 [shape = 's32[2]{0}', space=sflag, size = 0x8, scoped, tag = 'scoped memory for tpu_custom_call.1']
    #allocation4 [shape = 's32[2]{0}', space=sflag, size = 0x8, scoped, tag = 'scoped memory for tpu_custom_call.1']
    #allocation5 [shape = 'u8[8192]{0}', space=vmem, size = 0x2000, scoped, tag = 'input window, operand 1']
    #allocation6 [shape = 's32[2]{0}', space=sflag, size = 0x8, scoped, tag = 'scoped memory for tpu_custom_call.1']
    #allocation7 [shape = 'u8[8192]{0}', space=vmem, size = 0x2000, scoped, tag = 'input window, operand 2']
    #allocation8 [shape = 'u8[16384]{0}', space=vmem, size = 0x4000, scoped, tag = 'input window, operand 3, single buffered']
    #allocation9 [shape = 's32[1]{0}', space=sflag, size = 0x4, scoped, tag = 'scoped memory for tpu_custom_call.1']
    #allocation10 [shape = 'u8[16384]{0}', space=vmem, size = 0x4000, scoped, tag = 'input window, operand 4, single buffered']
    #allocation11 [shape = 'u8[16384]{0}', space=vmem, size = 0x4000, scoped, tag = 'input window, operand 5, single buffered']
    #allocation12 [shape = 's32[1]{0}', space=sflag, size = 0x4, scoped, tag = 'scoped memory for tpu_custom_call.1']
    #allocation13 [shape = 'u8[16384]{0}', space=vmem, size = 0x4000, scoped, tag = 'input window, operand 6, single buffered']
    #allocation14 [shape = 'u8[8192]{0}', space=vmem, size = 0x2000, scoped, tag = 'output window, operand 0']
    %12 = vsyncpa [#allocation3], 0
    %s13 = scalar_lea.sflag [#allocation3], 1
    %14 = vsyncpa %s13, 0
    %15 = vsyncpa [#allocation6], 0
    %s16 = scalar_lea.sflag [#allocation6], 1
    %17 = vsyncpa %s16, 0
    %18 = vsyncpa [#allocation9], 0
    %19 = vsyncpa [#allocation12], 0
    %20 = vsyncpa [#allocation4], 0
    %s21 = scalar_lea.sflag [#allocation4], 1
    %22 = vsyncpa %s21, 0
    loop: start=0, step=1, limit=4
    $region2: #{tpu_custom_call.1} parent=1 // loop_pre_header
      _
    $region3: #{tpu_custom_call.1} parent=1 // loop_header
      %s24 = sphi 0, %s28
      %p25 = scmp.ge.s32.totalorder %s24, 4
      %s34 = sphi 0, %s36
      %s37 = sphi 0, %s34
      %s38 = sphi 0, %s37
      %s54 = sphi 0, %s38
      %s60 = sphi 0, %s62
      %s63 = sphi 0, %s60
      %s64 = sphi 0, %s63
      %s80 = sphi 0, %s64
      %s86 = sphi 0, %s88
      %s89 = sphi 0, %s86
      %s90 = sphi 0, %s89
      %s106 = sphi 0, %s90
      %s110 = sphi 0, %s110
      %s112 = sphi 0, %s110
      %s113 = sphi 0, %s112
      %s127 = sphi 0, %s113
      %s131 = sphi 0, %s131
      %s133 = sphi 0, %s131
      %s134 = sphi 0, %s133
      %s148 = sphi 0, %s134
      %s152 = sphi 0, %s152
      %s154 = sphi 0, %s152
      %s155 = sphi 0, %s154
      %s169 = sphi 0, %s155
      %s173 = sphi 0, %s173
      %s175 = sphi 0, %s173
      %s176 = sphi 0, %s175
      %s190 = sphi 0, %s176
      %s196 = sphi 0, %s198
      %s199 = sphi 0, %s196
      %s200 = sphi 0, %s199
      %s216 = sphi 0, %s200
    $region4: #{tpu_custom_call.1} parent=1 // loop_header_branch
      %27 = sbr.rel (%p25) target = $region8
    $region5: #{tpu_custom_call.1} parent=1 // loop_body
      %s29 = ssub.s32 %s24, 1
      %s30 = ssub.s32 %s24, 2
      %s31 = sadd.s32 %s24, 1
      %s32 = ssub.s32 %s24, %s31
      %p33 = scmp.eq.s32.totalorder %s32, 0
      %s35 = sadd.s32 %s34, 1
      %s36 = scalar_select %p33, %s34, %s35
      %p39 = pneg %p33
      %p40 = scmp.eq.s32.totalorder %s24, 1
      %p41 = por %p39, %p40
      %p42 = scmp.ne.s32.totalorder %s34, %s37
      %p43 = scmp.eq.s32.totalorder %s24, 0
      %p44 = por %p42, %p43
      %p45 = scmp.ne.s32.totalorder %s34, %s37
      %p46 = scmp.eq.s32.totalorder %s29, 1
      %p47 = por %p45, %p46
      %p48 = scmp.ne.s32.totalorder %s37, %s38
      %p49 = scmp.eq.s32.totalorder %s29, 0
      %p50 = por %p48, %p49
      %p51 = scmp.ne.s32.totalorder %s37, %s38
      %p52 = scmp.eq.s32.totalorder %s30, 1
      %p53 = por %p51, %p52
      %p55 = scmp.ne.s32.totalorder %s38, %s54
      %p56 = scmp.eq.s32.totalorder %s30, 0
      %p57 = por %p55, %p56
      %s58 = ssub.s32 %s24, %s31
      %p59 = scmp.eq.s32.totalorder %s58, 0
      %s61 = sadd.s32 %s60, 1
      %s62 = scalar_select %p59, %s60, %s61
      %p65 = pneg %p59
      %p66 = scmp.eq.s32.totalorder %s24, 1
      %p67 = por %p65, %p66
      %p68 = scmp.ne.s32.totalorder %s60, %s63
      %p69 = scmp.eq.s32.totalorder %s24, 0
      %p70 = por %p68, %p69
      %p71 = scmp.ne.s32.totalorder %s60, %s63
      %p72 = scmp.eq.s32.totalorder %s29, 1
      %p73 = por %p71, %p72
      %p74 = scmp.ne.s32.totalorder %s63, %s64
      %p75 = scmp.eq.s32.totalorder %s29, 0
      %p76 = por %p74, %p75
      %p77 = scmp.ne.s32.totalorder %s63, %s64
      %p78 = scmp.eq.s32.totalorder %s30, 1
      %p79 = por %p77, %p78
      %p81 = scmp.ne.s32.totalorder %s64, %s80
      %p82 = scmp.eq.s32.totalorder %s30, 0
      %p83 = por %p81, %p82
      %s84 = ssub.s32 %s24, %s31
      %p85 = scmp.eq.s32.totalorder %s84, 0
      %s87 = sadd.s32 %s86, 1
      %s88 = scalar_select %p85, %s86, %s87
      %p91 = pneg %p85
      %p92 = scmp.eq.s32.totalorder %s24, 1
      %p93 = por %p91, %p92
      %p94 = scmp.ne.s32.totalorder %s86, %s89
      %p95 = scmp.eq.s32.totalorder %s24, 0
      %p96 = por %p94, %p95
      %p97 = scmp.ne.s32.totalorder %s86, %s89
      %p98 = scmp.eq.s32.totalorder %s29, 1
      %p99 = por %p97, %p98
      %p100 = scmp.ne.s32.totalorder %s89, %s90
      %p101 = scmp.eq.s32.totalorder %s29, 0
      %p102 = por %p100, %p101
      %p103 = scmp.ne.s32.totalorder %s89, %s90
      %p104 = scmp.eq.s32.totalorder %s30, 1
      %p105 = por %p103, %p104
      %p107 = scmp.ne.s32.totalorder %s90, %s106
      %p108 = scmp.eq.s32.totalorder %s30, 0
      %p109 = por %p107, %p108
      %s111 = sadd.s32 %s110, 1
      %p114 = scmp.eq.s32.totalorder %s24, 1
      %p115 = scmp.ne.s32.totalorder %s110, %s112
      %p116 = scmp.eq.s32.totalorder %s24, 0
      %p117 = por %p115, %p116
      %p118 = scmp.ne.s32.totalorder %s110, %s112
      %p119 = scmp.eq.s32.totalorder %s29, 1
      %p120 = por %p118, %p119
      %p121 = scmp.ne.s32.totalorder %s112, %s113
      %p122 = scmp.eq.s32.totalorder %s29, 0
      %p123 = por %p121, %p122
      %p124 = scmp.ne.s32.totalorder %s112, %s113
      %p125 = scmp.eq.s32.totalorder %s30, 1
      %p126 = por %p124, %p125
      %p128 = scmp.ne.s32.totalorder %s113, %s127
      %p129 = scmp.eq.s32.totalorder %s30, 0
      %p130 = por %p128, %p129
      %s132 = sadd.s32 %s131, 1
      %p135 = scmp.eq.s32.totalorder %s24, 1
      %p136 = scmp.ne.s32.totalorder %s131, %s133
      %p137 = scmp.eq.s32.totalorder %s24, 0
      %p138 = por %p136, %p137
      %p139 = scmp.ne.s32.totalorder %s131, %s133
      %p140 = scmp.eq.s32.totalorder %s29, 1
      %p141 = por %p139, %p140
      %p142 = scmp.ne.s32.totalorder %s133, %s134
      %p143 = scmp.eq.s32.totalorder %s29, 0
      %p144 = por %p142, %p143
      %p145 = scmp.ne.s32.totalorder %s133, %s134
      %p146 = scmp.eq.s32.totalorder %s30, 1
      %p147 = por %p145, %p146
      %p149 = scmp.ne.s32.totalorder %s134, %s148
      %p150 = scmp.eq.s32.totalorder %s30, 0
      %p151 = por %p149, %p150
      %s153 = sadd.s32 %s152, 1
      %p156 = scmp.eq.s32.totalorder %s24, 1
      %p157 = scmp.ne.s32.totalorder %s152, %s154
      %p158 = scmp.eq.s32.totalorder %s24, 0
      %p159 = por %p157, %p158
      %p160 = scmp.ne.s32.totalorder %s152, %s154
      %p161 = scmp.eq.s32.totalorder %s29, 1
      %p162 = por %p160, %p161
      %p163 = scmp.ne.s32.totalorder %s154, %s155
      %p164 = scmp.eq.s32.totalorder %s29, 0
      %p165 = por %p163, %p164
      %p166 = scmp.ne.s32.totalorder %s154, %s155
      %p167 = scmp.eq.s32.totalorder %s30, 1
      %p168 = por %p166, %p167
      %p170 = scmp.ne.s32.totalorder %s155, %s169
      %p171 = scmp.eq.s32.totalorder %s30, 0
      %p172 = por %p170, %p171
      %s174 = sadd.s32 %s173, 1
      %p177 = scmp.eq.s32.totalorder %s24, 1
      %p178 = scmp.ne.s32.totalorder %s173, %s175
      %p179 = scmp.eq.s32.totalorder %s24, 0
      %p180 = por %p178, %p179
      %p181 = scmp.ne.s32.totalorder %s173, %s175
      %p182 = scmp.eq.s32.totalorder %s29, 1
      %p183 = por %p181, %p182
      %p184 = scmp.ne.s32.totalorder %s175, %s176
      %p185 = scmp.eq.s32.totalorder %s29, 0
      %p186 = por %p184, %p185
      %p187 = scmp.ne.s32.totalorder %s175, %s176
      %p188 = scmp.eq.s32.totalorder %s30, 1
      %p189 = por %p187, %p188
      %p191 = scmp.ne.s32.totalorder %s176, %s190
      %p192 = scmp.eq.s32.totalorder %s30, 0
      %p193 = por %p191, %p192
      %s194 = ssub.s32 %s24, %s31
      %p195 = scmp.eq.s32.totalorder %s194, 0
      %s197 = sadd.s32 %s196, 1
      %s198 = scalar_select %p195, %s196, %s197
      %p201 = pneg %p195
      %p202 = scmp.eq.s32.totalorder %s24, 1
      %p203 = por %p201, %p202
      %p204 = scmp.ne.s32.totalorder %s196, %s199
      %p205 = scmp.eq.s32.totalorder %s24, 0
      %p206 = por %p204, %p205
      %p207 = scmp.ne.s32.totalorder %s196, %s199
      %p208 = scmp.eq.s32.totalorder %s29, 1
      %p209 = por %p207, %p208
      %p210 = scmp.ne.s32.totalorder %s199, %s200
      %p211 = scmp.eq.s32.totalorder %s29, 0
      %p212 = por %p210, %p211
      %p213 = scmp.ne.s32.totalorder %s199, %s200
      %p214 = scmp.eq.s32.totalorder %s30, 1
      %p215 = por %p213, %p214
      %p217 = scmp.ne.s32.totalorder %s200, %s216
      %p218 = scmp.eq.s32.totalorder %s30, 0
      %p219 = por %p217, %p218
      %p220 = scmp.le.s32.totalorder 1, %s24
      %p221 = scmp.lt.s32.totalorder %s24, 3
      %p222 = pnand %p220, %p221
      %p223 = pneg %p222
      // Predicated region
      $region9: #{tpu_custom_call.1} parent=5 // pred_check
        _
      $region10: #{tpu_custom_call.1} parent=5 // pred_check_branch
        %225 = sbr.rel (%p222) target = $region12
      $region11: #{tpu_custom_call.1} parent=5 // pred_region
        %s226 = ssub.s32 %s24, 1
        // Predicated region
        $region13: #{tpu_custom_call.1} parent=11 // pred_check
          %p227 = pneg %p123
        $region14: #{tpu_custom_call.1} parent=11 // pred_check_branch
          %229 = sbr.rel (%p227) target = $region16
        $region15: #{tpu_custom_call.1} parent=11 // pred_region
          %231 = vsyncadd [#allocation9], 0
          %s232 = sshll.u32 %s3, 4
          %s233 = int_to_ptr.hbm [resolvable:$true] %s232
          %s234 = sshll.u32 [#allocation8], 4
          %s235 = int_to_ptr.vmem [resolvable:$true] %s234
          %240 = dma.hbm_to_vmem [thread:$0]  %s233, 512, %s235, [#allocation9], 128, 128, 8
        $region16: #{tpu_custom_call.1} parent=11 // pred_fallthru
          _
        // Predicated region
        $region17: #{tpu_custom_call.1} parent=11 // pred_check
          %p241 = pneg %p144
        $region18: #{tpu_custom_call.1} parent=11 // pred_check_branch
          %243 = sbr.rel (%p241) target = $region20
        $region19: #{tpu_custom_call.1} parent=11 // pred_region
          %245 = vsyncadd [#allocation9], 0
          %s246 = sshll.u32 %s4, 4
          %s247 = int_to_ptr.hbm [resolvable:$true] %s246
          %s248 = sshll.u32 [#allocation10], 4
          %s249 = int_to_ptr.vmem [resolvable:$true] %s248
          %254 = dma.hbm_to_vmem [thread:$0]  %s247, 512, %s249, [#allocation9], 128, 128, 8
        $region20: #{tpu_custom_call.1} parent=11 // pred_fallthru
          _
        // Predicated region
        $region21: #{tpu_custom_call.1} parent=11 // pred_check
          %p255 = pneg %p165
        $region22: #{tpu_custom_call.1} parent=11 // pred_check_branch
          %257 = sbr.rel (%p255) target = $region24
        $region23: #{tpu_custom_call.1} parent=11 // pred_region
          %259 = vsyncadd [#allocation12], 0
          %s260 = sshll.u32 %s5, 4
          %s261 = int_to_ptr.hbm [resolvable:$true] %s260
          %s262 = sshll.u32 [#allocation11], 4
          %s263 = int_to_ptr.vmem [resolvable:$true] %s262
          %268 = dma.hbm_to_vmem [thread:$0]  %s261, 512, %s263, [#allocation12], 128, 128, 8
        $region24: #{tpu_custom_call.1} parent=11 // pred_fallthru
          _
        // Predicated region
        $region25: #{tpu_custom_call.1} parent=11 // pred_check
          %p269 = pneg %p186
        $region26: #{tpu_custom_call.1} parent=11 // pred_check_branch
          %271 = sbr.rel (%p269) target = $region28
        $region27: #{tpu_custom_call.1} parent=11 // pred_region
          %273 = vsyncadd [#allocation12], 0
          %s274 = sshll.u32 %s6, 4
          %s275 = int_to_ptr.hbm [resolvable:$true] %s274
          %s276 = sshll.u32 [#allocation13], 4
          %s277 = int_to_ptr.vmem [resolvable:$true] %s276
          %282 = dma.hbm_to_vmem [thread:$0]  %s275, 512, %s277, [#allocation12], 128, 128, 8
        $region28: #{tpu_custom_call.1} parent=11 // pred_fallthru
          _
      $region12: #{tpu_custom_call.1} parent=5 // pred_fallthru
        _
      %p283 = scmp.lt.s32.totalorder %s24, 2
      // Predicated region
      $region29: #{tpu_custom_call.1} parent=5 // pred_check
        %p284 = pneg %p283
      $region30: #{tpu_custom_call.1} parent=5 // pred_check_branch
        %286 = sbr.rel (%p284) target = $region32
      $region31: #{tpu_custom_call.1} parent=5 // pred_region
        // Predicated region
        $region33: #{tpu_custom_call.1} parent=31 // pred_check
          %p287 = pneg %p44
        $region34: #{tpu_custom_call.1} parent=31 // pred_check_branch
          %289 = sbr.rel (%p287) target = $region36
        $region35: #{tpu_custom_call.1} parent=31 // pred_region
          %s290 = sand.u32 %s34, 1
          %s291 = scalar_lea.sflag [#allocation3], %s290
          %s292 = sand.u32 %s34, 1
          %s293 = smul.addr %s292, 8
          %s294 = scalar_lea.vmem [#allocation2], %s293
          %296 = vsyncadd %s291, 0
          %s297 = smul.addr %s24, 8
          %s298 = scalar_lea.hbm %s0, %s297
          %s300 = sshll.u32 %s298, 4
          %s301 = int_to_ptr.hbm [resolvable:$true] %s300
          %s302 = sshll.u32 %s294, 4
          %s303 = int_to_ptr.vmem [resolvable:$true] %s302
          %305 = dma.hbm_to_vmem [thread:$0]  %s301, 128, %s303, %s291
        $region36: #{tpu_custom_call.1} parent=31 // pred_fallthru
          _
        // Predicated region
        $region37: #{tpu_custom_call.1} parent=31 // pred_check
          %p306 = pneg %p70
        $region38: #{tpu_custom_call.1} parent=31 // pred_check_branch
          %308 = sbr.rel (%p306) target = $region40
        $region39: #{tpu_custom_call.1} parent=31 // pred_region
          %s309 = sand.u32 %s24, 1
          %s310 = scalar_lea.sflag [#allocation6], %s309
          %s311 = sand.u32 %s60, 1
          %s312 = smul.addr %s311, 8
          %s313 = scalar_lea.vmem [#allocation5], %s312
          %315 = vsyncadd %s310, 0
          %s316 = smul.addr %s24, 8
          %s317 = scalar_lea.hbm %s1, %s316
          %s319 = sshll.u32 %s317, 4
          %s320 = int_to_ptr.hbm [resolvable:$true] %s319
          %s321 = sshll.u32 %s313, 4
          %s322 = int_to_ptr.vmem [resolvable:$true] %s321
          %324 = dma.hbm_to_vmem [thread:$0]  %s320, 128, %s322, %s310
        $region40: #{tpu_custom_call.1} parent=31 // pred_fallthru
          _
        // Predicated region
        $region41: #{tpu_custom_call.1} parent=31 // pred_check
          %p325 = pneg %p96
        $region42: #{tpu_custom_call.1} parent=31 // pred_check_branch
          %327 = sbr.rel (%p325) target = $region44
        $region43: #{tpu_custom_call.1} parent=31 // pred_region
          %s328 = sand.u32 %s24, 1
          %s329 = scalar_lea.sflag [#allocation6], %s328
          %s330 = sand.u32 %s86, 1
          %s331 = smul.addr %s330, 8
          %s332 = scalar_lea.vmem [#allocation7], %s331
          %334 = vsyncadd %s329, 0
          %s335 = smul.addr %s24, 8
          %s336 = scalar_lea.hbm %s2, %s335
          %s338 = sshll.u32 %s336, 4
          %s339 = int_to_ptr.hbm [resolvable:$true] %s338
          %s340 = sshll.u32 %s332, 4
          %s341 = int_to_ptr.vmem [resolvable:$true] %s340
          %343 = dma.hbm_to_vmem [thread:$0]  %s339, 128, %s341, %s329
        $region44: #{tpu_custom_call.1} parent=31 // pred_fallthru
          _
      $region32: #{tpu_custom_call.1} parent=5 // pred_fallthru
        _
      %p344 = scmp.le.s32.totalorder 1, %s24
      %p345 = scmp.lt.s32.totalorder %s24, 3
      %p346 = pnand %p344, %p345
      %p347 = pneg %p346
      // Predicated region
      $region45: #{tpu_custom_call.1} parent=5 // pred_check
        _
      $region46: #{tpu_custom_call.1} parent=5 // pred_check_branch
        %349 = sbr.rel (%p346) target = $region48
      $region47: #{tpu_custom_call.1} parent=5 // pred_region
        %s350 = ssub.s32 %s24, 1
        %s351 = sand.u32 %s37, 1
        %s352 = scalar_lea.sflag [#allocation3], %s351
        %s353 = sand.u32 %s37, 1
        %s354 = smul.addr %s353, 8
        %s355 = scalar_lea.vmem [#allocation2], %s354
        // Predicated region
        $region49: #{tpu_custom_call.1} parent=47 // pred_check
          %p356 = pneg %p50
        $region50: #{tpu_custom_call.1} parent=47 // pred_check_branch
          %358 = sbr.rel (%p356) target = $region52
        $region51: #{tpu_custom_call.1} parent=47 // pred_region
          %360 = dma.done %s352, 128
        $region52: #{tpu_custom_call.1} parent=47 // pred_fallthru
          _
        %s361 = sand.u32 %s29, 1
        %s362 = scalar_lea.sflag [#allocation6], %s361
        %s363 = sand.u32 %s63, 1
        %s364 = smul.addr %s363, 8
        %s365 = scalar_lea.vmem [#allocation5], %s364
        // Predicated region
        $region53: #{tpu_custom_call.1} parent=47 // pred_check
          %p366 = pneg %p76
        $region54: #{tpu_custom_call.1} parent=47 // pred_check_branch
          %368 = sbr.rel (%p366) target = $region56
        $region55: #{tpu_custom_call.1} parent=47 // pred_region
          %370 = dma.done %s362, 128
        $region56: #{tpu_custom_call.1} parent=47 // pred_fallthru
          _
        %s371 = sand.u32 %s29, 1
        %s372 = scalar_lea.sflag [#allocation6], %s371
        %s373 = sand.u32 %s89, 1
        %s374 = smul.addr %s373, 8
        %s375 = scalar_lea.vmem [#allocation7], %s374
        // Predicated region
        $region57: #{tpu_custom_call.1} parent=47 // pred_check
          %p376 = pneg %p102
        $region58: #{tpu_custom_call.1} parent=47 // pred_check_branch
          %378 = sbr.rel (%p376) target = $region60
        $region59: #{tpu_custom_call.1} parent=47 // pred_region
          %380 = dma.done %s372, 128
        $region60: #{tpu_custom_call.1} parent=47 // pred_fallthru
          _
        // Predicated region
        $region61: #{tpu_custom_call.1} parent=47 // pred_check
          %p381 = pneg %p123
        $region62: #{tpu_custom_call.1} parent=47 // pred_check_branch
          %383 = sbr.rel (%p381) target = $region64
        $region63: #{tpu_custom_call.1} parent=47 // pred_region
          %385 = dma.done [#allocation9], 512
        $region64: #{tpu_custom_call.1} parent=47 // pred_fallthru
          _
        // Predicated region
        $region65: #{tpu_custom_call.1} parent=47 // pred_check
          %p386 = pneg %p144
        $region66: #{tpu_custom_call.1} parent=47 // pred_check_branch
          %388 = sbr.rel (%p386) target = $region68
        $region67: #{tpu_custom_call.1} parent=47 // pred_region
          %390 = dma.done [#allocation9], 512
        $region68: #{tpu_custom_call.1} parent=47 // pred_fallthru
          _
        // Predicated region
        $region69: #{tpu_custom_call.1} parent=47 // pred_check
          %p391 = pneg %p165
        $region70: #{tpu_custom_call.1} parent=47 // pred_check_branch
          %393 = sbr.rel (%p391) target = $region72
        $region71: #{tpu_custom_call.1} parent=47 // pred_region
          %395 = dma.done [#allocation12], 512
        $region72: #{tpu_custom_call.1} parent=47 // pred_fallthru
          _
        // Predicated region
        $region73: #{tpu_custom_call.1} parent=47 // pred_check
          %p396 = pneg %p186
        $region74: #{tpu_custom_call.1} parent=47 // pred_check_branch
          %398 = sbr.rel (%p396) target = $region76
        $region75: #{tpu_custom_call.1} parent=47 // pred_region
          %400 = dma.done [#allocation12], 512
        $region76: #{tpu_custom_call.1} parent=47 // pred_fallthru
          _
        %s401 = sand.u32 %s37, 1
        %s402 = scalar_lea.sflag [#allocation3], %s401
        %s403 = sand.u32 %s37, 1
        %s404 = smul.addr %s403, 8
        %s405 = scalar_lea.vmem [#allocation2], %s404
        %p406 = pneg %p50
        %p407 = pneg %p47
        %s408 = sand.u32 %s29, 1
        %s409 = scalar_lea.sflag [#allocation6], %s408
        %s410 = sand.u32 %s63, 1
        %s411 = smul.addr %s410, 8
        %s412 = scalar_lea.vmem [#allocation5], %s411
        %p413 = pneg %p76
        %p414 = pneg %p73
        %s415 = sand.u32 %s29, 1
        %s416 = scalar_lea.sflag [#allocation6], %s415
        %s417 = sand.u32 %s89, 1
        %s418 = smul.addr %s417, 8
        %s419 = scalar_lea.vmem [#allocation7], %s418
        %p420 = pneg %p102
        %p421 = pneg %p99
        %p422 = pneg %p123
        %p423 = pneg %p120
        %p424 = pneg %p144
        %p425 = pneg %p141
        %p426 = pneg %p165
        %p427 = pneg %p162
        %p428 = pneg %p186
        %p429 = pneg %p183
        %p430 = pneg %p212
        %p431 = pneg %p209
        %s432 = sand.u32 %s199, 1
        %s433 = scalar_lea.sflag [#allocation4], %s432
        %s434 = sand.u32 %s199, 1
        %s435 = smul.addr %s434, 8
        %s436 = scalar_lea.vmem [#allocation14], %s435
        %v437 = vld [vmem:[%s355] sm:$0xff]
        %v438 = vld [vmem:[%s365] sm:$0xff]
        %v439 = vld [vmem:[%s375] sm:$0xff]
        %v440 = vld [vmem:[#allocation8] sm:$0xff]
        %v441 = vld [vmem:[#allocation8 + $0x8] sm:$0xff]
        %v442 = vld [vmem:[#allocation8 + $0x10] sm:$0xff]
        %v443 = vld [vmem:[#allocation8 + $0x18] sm:$0xff]
        %vm444 = vcmask 261120
        %v446 = vsel %vm444, %v437, 0
        %448 = vmatpush.msra.mxu0 0.0
        %449 = vmatpush.msra.mxu0 0.0
        %450 = vmatpush.msra.mxu0 0.0
        %451 = vmatpush.msra.mxu0 0.0
        %452 = vmatpush.msra.mxu0 0.0
        %453 = vmatpush.msra.mxu0 0.0
        %454 = vmatpush.msra.mxu0 0.0
        %455 = vmatpush.msra.mxu0 0.0
        %456 = vmatpush.msra.mxu0 0.0
        %457 = vmatpush.msra.mxu0 0.0
        %458 = vmatpush.msra.mxu0 0.0
        %459 = vmatpush.msra.mxu0 0.0
        %460 = vmatpush.msra.mxu0 %v443
        %461 = vmatpush.msra.mxu0 %v442
        %462 = vmatpush.msra.mxu0 %v441
        %463 = vmatpush.msra.mxu0 %v440
        %464 = vmatmul.f32.gmra.mxu0 %v446
        %v465 = vpop.f32.mrf.mxu0
        %v466 = vadd.f32 0.0, %v465
        %467 = vdwg.mxu0
        %v468 = vld [vmem:[#allocation10] sm:$0xff]
        %v469 = vld [vmem:[#allocation10 + $0x8] sm:$0xff]
        %v470 = vld [vmem:[#allocation10 + $0x10] sm:$0xff]
        %v471 = vld [vmem:[#allocation10 + $0x18] sm:$0xff]
        %v473 = vsel %vm444, %v438, 0
        %475 = vmatpush.msra.mxu0 0.0
        %476 = vmatpush.msra.mxu0 0.0
        %477 = vmatpush.msra.mxu0 0.0
        %478 = vmatpush.msra.mxu0 0.0
        %479 = vmatpush.msra.mxu0 0.0
        %480 = vmatpush.msra.mxu0 0.0
        %481 = vmatpush.msra.mxu0 0.0
        %482 = vmatpush.msra.mxu0 0.0
        %483 = vmatpush.msra.mxu0 0.0
        %484 = vmatpush.msra.mxu0 0.0
        %485 = vmatpush.msra.mxu0 0.0
        %486 = vmatpush.msra.mxu0 0.0
        %487 = vmatpush.msra.mxu0 %v471
        %488 = vmatpush.msra.mxu0 %v470
        %489 = vmatpush.msra.mxu0 %v469
        %490 = vmatpush.msra.mxu0 %v468
        %491 = vmatmul.f32.gmra.mxu0 %v473
        %v492 = vpop.f32.mrf.mxu0
        %v493 = vadd.f32 0.0, %v492
        %494 = vdwg.mxu0
        %v495 = vld [vmem:[#allocation11] sm:$0xff]
        %v496 = vld [vmem:[#allocation11 + $0x8] sm:$0xff]
        %v497 = vld [vmem:[#allocation11 + $0x10] sm:$0xff]
        %v498 = vld [vmem:[#allocation11 + $0x18] sm:$0xff]
        %v500 = vsel %vm444, %v439, 0
        %502 = vmatpush.msra.mxu0 0.0
        %503 = vmatpush.msra.mxu0 0.0
        %504 = vmatpush.msra.mxu0 0.0
        %505 = vmatpush.msra.mxu0 0.0
        %506 = vmatpush.msra.mxu0 0.0
        %507 = vmatpush.msra.mxu0 0.0
        %508 = vmatpush.msra.mxu0 0.0
        %509 = vmatpush.msra.mxu0 0.0
        %510 = vmatpush.msra.mxu0 0.0
        %511 = vmatpush.msra.mxu0 0.0
        %512 = vmatpush.msra.mxu0 0.0
        %513 = vmatpush.msra.mxu0 0.0
        %514 = vmatpush.msra.mxu0 %v498
        %515 = vmatpush.msra.mxu0 %v497
        %516 = vmatpush.msra.mxu0 %v496
        %517 = vmatpush.msra.mxu0 %v495
        %518 = vmatmul.f32.gmra.mxu0 %v500
        %v519 = vpop.f32.mrf.mxu0
        %v520 = vadd.f32 0.0, %v519
        %521 = vdwg.mxu0
        %vm522 = vcmask 64512
        %v524 = vsel %vm522, %v466, 0
        %v527 = vsel %vm522, %v493, 0
        %529 = vmatpush.xpose.msra.mxu0 0.0
        %530 = vmatpush.xpose.msra.mxu0 0.0
        %531 = vmatpush.xpose.msra.mxu0 0.0
        %532 = vmatpush.xpose.msra.mxu0 0.0
        %533 = vmatpush.xpose.msra.mxu0 0.0
        %534 = vmatpush.xpose.msra.mxu0 0.0
        %535 = vmatpush.xpose.msra.mxu0 0.0
        %536 = vmatpush.xpose.msra.mxu0 0.0
        %537 = vmatpush.xpose.msra.mxu0 0.0
        %538 = vmatpush.xpose.msra.mxu0 0.0
        %539 = vmatpush.xpose.msra.mxu0 0.0
        %540 = vmatpush.xpose.msra.mxu0 0.0
        %541 = vmatpush.xpose.msra.mxu0 0.0
        %542 = vmatpush.xpose.msra.mxu0 0.0
        %543 = vmatpush.xpose.msra.mxu0 0.0
        %544 = vmatpush.xpose.msra.mxu0 %v527
        %545 = vmatmul.f32.gmra.mxu0 %v524
        %v546 = vpop.f32.mrf.mxu0
        %v547 = vadd.f32 0.0, %v546
        %548 = vdwg.mxu0
        %v549 = vmul.f32 %v547, 0.35355338
        %v550 = vsel %vm522, %v549, -inf
        %551 = vmax.xlane.f32.xlu0 %v550
        %v552 = vpop.xlane.xlu0 %551
        %v553 = vsub.f32 %v549, %v552
        %v554 = vmul.f32 %v553, 1.442695
        %v555 = vpow.pop %v554
        %v556 = vsel %vm522, %v555, 0.0
        %557 = vadd.xlane.f32.xlu0 %v556
        %v558 = vpop.xlane.xlu0 %557
        %v560 = vsel %vm522, %v555, 0
        %562 = vmatpush.msra.mxu0 0.0
        %563 = vmatpush.msra.mxu0 0.0
        %564 = vmatpush.msra.mxu0 0.0
        %565 = vmatpush.msra.mxu0 0.0
        %566 = vmatpush.msra.mxu0 0.0
        %567 = vmatpush.msra.mxu0 0.0
        %568 = vmatpush.msra.mxu0 0.0
        %569 = vmatpush.msra.mxu0 0.0
        %570 = vmatpush.msra.mxu0 0.0
        %571 = vmatpush.msra.mxu0 0.0
        %572 = vmatpush.msra.mxu0 0.0
        %573 = vmatpush.msra.mxu0 0.0
        %574 = vmatpush.msra.mxu0 0.0
        %575 = vmatpush.msra.mxu0 0.0
        %576 = vmatpush.msra.mxu0 0.0
        %577 = vmatpush.msra.mxu0 %v520
        %578 = vmatmul.f32.gmra.mxu0 %v560
        %v579 = vpop.f32.mrf.mxu0
        %v580 = vadd.f32 0.0, %v579
        %581 = vdwg.mxu0
        %v582 = vrcp.pop %v558
        %v583 = vmul.f32 %v558, %v582
        %v584 = vsub.f32 1.0, %v583
        %v585 = vmul.f32 %v582, %v584
        %v586 = vadd.f32 %v582, %v585
        %vm587 = vweird.f32 %v558
        %vm588 = vweird.f32 %v582
        %vm589 = vmor %vm587, %vm588
        %v590 = vsel %vm589, %v582, %v586
        %v591 = vand.u32 2147483647, %v558
        %vm592 = vcmp.eq.f32.partialorder %v591, 8.507059e+37
        %v593 = vand.u32 %v558, 2147483648
        %v594 = vor.u32 1.1754944e-38, %v593
        %v595 = vsel %vm592, %v594, %v590
        %v596 = vmul.f32 %v580, %v595
        %597 = vrot.lane.b32.xlu0 %v466, 120
        %v598 = vpop.permute.xlu0 %597
        %599 = vrot.lane.b32.xlu0 %v493, 120
        %v600 = vpop.permute.xlu0 %599
        %v601 = vsel %vm522, %v598, 0
        %v603 = vsel %vm522, %v600, 0
        %605 = vmatpush.xpose.msra.mxu0 0.0
        %606 = vmatpush.xpose.msra.mxu0 0.0
        %607 = vmatpush.xpose.msra.mxu0 0.0
        %608 = vmatpush.xpose.msra.mxu0 0.0
        %609 = vmatpush.xpose.msra.mxu0 0.0
        %610 = vmatpush.xpose.msra.mxu0 0.0
        %611 = vmatpush.xpose.msra.mxu0 0.0
        %612 = vmatpush.xpose.msra.mxu0 0.0
        %613 = vmatpush.xpose.msra.mxu0 0.0
        %614 = vmatpush.xpose.msra.mxu0 0.0
        %615 = vmatpush.xpose.msra.mxu0 0.0
        %616 = vmatpush.xpose.msra.mxu0 0.0
        %617 = vmatpush.xpose.msra.mxu0 0.0
        %618 = vmatpush.xpose.msra.mxu0 0.0
        %619 = vmatpush.xpose.msra.mxu0 0.0
        %620 = vmatpush.xpose.msra.mxu0 %v603
        %621 = vmatmul.f32.gmra.mxu0 %v601
        %v622 = vpop.f32.mrf.mxu0
        %v623 = vadd.f32 0.0, %v622
        %624 = vdwg.mxu0
        %v625 = vmul.f32 %v623, 0.35355338
        %v626 = vsel %vm522, %v625, -inf
        %627 = vmax.xlane.f32.xlu0 %v626
        %v628 = vpop.xlane.xlu0 %627
        %v629 = vsub.f32 %v625, %v628
        %v630 = vmul.f32 %v629, 1.442695
        %v631 = vpow.pop %v630
        %v632 = vsel %vm522, %v631, 0.0
        %633 = vadd.xlane.f32.xlu0 %v632
        %v634 = vpop.xlane.xlu0 %633
        %636 = vrot.lane.b32.xlu0 %v520, 120
        %v637 = vpop.permute.xlu0 %636
        %v640 = vsel %vm522, %v631, 0
        %642 = vmatpush.msra.mxu0 0.0
        %643 = vmatpush.msra.mxu0 0.0
        %644 = vmatpush.msra.mxu0 0.0
        %645 = vmatpush.msra.mxu0 0.0
        %646 = vmatpush.msra.mxu0 0.0
        %647 = vmatpush.msra.mxu0 0.0
        %648 = vmatpush.msra.mxu0 0.0
        %649 = vmatpush.msra.mxu0 0.0
        %650 = vmatpush.msra.mxu0 0.0
        %651 = vmatpush.msra.mxu0 0.0
        %652 = vmatpush.msra.mxu0 0.0
        %653 = vmatpush.msra.mxu0 0.0
        %654 = vmatpush.msra.mxu0 0.0
        %655 = vmatpush.msra.mxu0 0.0
        %656 = vmatpush.msra.mxu0 0.0
        %657 = vmatpush.msra.mxu0 %v637
        %658 = vmatmul.f32.gmra.mxu0 %v640
        %v659 = vpop.f32.mrf.mxu0
        %v660 = vadd.f32 0.0, %v659
        %661 = vdwg.mxu0
        %v662 = vrcp.pop %v634
        %v663 = vmul.f32 %v634, %v662
        %v664 = vsub.f32 1.0, %v663
        %v665 = vmul.f32 %v662, %v664
        %v666 = vadd.f32 %v662, %v665
        %vm667 = vweird.f32 %v634
        %vm668 = vweird.f32 %v662
        %vm669 = vmor %vm667, %vm668
        %v670 = vsel %vm669, %v662, %v666
        %v671 = vand.u32 2147483647, %v634
        %vm672 = vcmp.eq.f32.partialorder %v671, 8.507059e+37
        %v673 = vand.u32 %v634, 2147483648
        %v674 = vor.u32 1.1754944e-38, %v673
        %v675 = vsel %vm672, %v674, %v670
        %v676 = vmul.f32 %v660, %v675
        %677 = vrot.lane.b32.xlu0 %v466, 112
        %v678 = vpop.permute.xlu0 %677
        %679 = vrot.lane.b32.xlu0 %v493, 112
        %v680 = vpop.permute.xlu0 %679
        %v681 = vsel %vm522, %v678, 0
        %v683 = vsel %vm522, %v680, 0
        %685 = vmatpush.xpose.msra.mxu0 0.0
        %686 = vmatpush.xpose.msra.mxu0 0.0
        %687 = vmatpush.xpose.msra.mxu0 0.0
        %688 = vmatpush.xpose.msra.mxu0 0.0
        %689 = vmatpush.xpose.msra.mxu0 0.0
        %690 = vmatpush.xpose.msra.mxu0 0.0
        %691 = vmatpush.xpose.msra.mxu0 0.0
        %692 = vmatpush.xpose.msra.mxu0 0.0
        %693 = vmatpush.xpose.msra.mxu0 0.0
        %694 = vmatpush.xpose.msra.mxu0 0.0
        %695 = vmatpush.xpose.msra.mxu0 0.0
        %696 = vmatpush.xpose.msra.mxu0 0.0
        %697 = vmatpush.xpose.msra.mxu0 0.0
        %698 = vmatpush.xpose.msra.mxu0 0.0
        %699 = vmatpush.xpose.msra.mxu0 0.0
        %700 = vmatpush.xpose.msra.mxu0 %v683
        %701 = vmatmul.f32.gmra.mxu0 %v681
        %v702 = vpop.f32.mrf.mxu0
        %v703 = vadd.f32 0.0, %v702
        %704 = vdwg.mxu0
        %v705 = vmul.f32 %v703, 0.35355338
        %v706 = vsel %vm522, %v705, -inf
        %707 = vmax.xlane.f32.xlu0 %v706
        %v708 = vpop.xlane.xlu0 %707
        %v709 = vsub.f32 %v705, %v708
        %v710 = vmul.f32 %v709, 1.442695
        %v711 = vpow.pop %v710
        %v712 = vsel %vm522, %v711, 0.0
        %713 = vadd.xlane.f32.xlu0 %v712
        %v714 = vpop.xlane.xlu0 %713
        %715 = vrot.lane.b32.xlu0 %v520, 112
        %v716 = vpop.permute.xlu0 %715
        %v719 = vsel %vm522, %v711, 0
        %721 = vmatpush.msra.mxu0 0.0
        %722 = vmatpush.msra.mxu0 0.0
        %723 = vmatpush.msra.mxu0 0.0
        %724 = vmatpush.msra.mxu0 0.0
        %725 = vmatpush.msra.mxu0 0.0
        %726 = vmatpush.msra.mxu0 0.0
        %727 = vmatpush.msra.mxu0 0.0
        %728 = vmatpush.msra.mxu0 0.0
        %729 = vmatpush.msra.mxu0 0.0
        %730 = vmatpush.msra.mxu0 0.0
        %731 = vmatpush.msra.mxu0 0.0
        %732 = vmatpush.msra.mxu0 0.0
        %733 = vmatpush.msra.mxu0 0.0
        %734 = vmatpush.msra.mxu0 0.0
        %735 = vmatpush.msra.mxu0 0.0
        %736 = vmatpush.msra.mxu0 %v716
        %737 = vmatmul.f32.gmra.mxu0 %v719
        %v738 = vpop.f32.mrf.mxu0
        %v739 = vadd.f32 0.0, %v738
        %740 = vdwg.mxu0
        %v741 = vrcp.pop %v714
        %v742 = vmul.f32 %v714, %v741
        %v743 = vsub.f32 1.0, %v742
        %v744 = vmul.f32 %v741, %v743
        %v745 = vadd.f32 %v741, %v744
        %vm746 = vweird.f32 %v714
        %vm747 = vweird.f32 %v741
        %vm748 = vmor %vm746, %vm747
        %v749 = vsel %vm748, %v741, %v745
        %v750 = vand.u32 2147483647, %v714
        %vm751 = vcmp.eq.f32.partialorder %v750, 8.507059e+37
        %v752 = vand.u32 %v714, 2147483648
        %v753 = vor.u32 1.1754944e-38, %v752
        %v754 = vsel %vm751, %v753, %v749
        %v755 = vmul.f32 %v739, %v754
        %756 = vrot.lane.b32.xlu0 %v466, 104
        %v757 = vpop.permute.xlu0 %756
        %758 = vrot.lane.b32.xlu0 %v493, 104
        %v759 = vpop.permute.xlu0 %758
        %v760 = vsel %vm522, %v757, 0
        %v762 = vsel %vm522, %v759, 0
        %764 = vmatpush.xpose.msra.mxu0 0.0
        %765 = vmatpush.xpose.msra.mxu0 0.0
        %766 = vmatpush.xpose.msra.mxu0 0.0
        %767 = vmatpush.xpose.msra.mxu0 0.0
        %768 = vmatpush.xpose.msra.mxu0 0.0
        %769 = vmatpush.xpose.msra.mxu0 0.0
        %770 = vmatpush.xpose.msra.mxu0 0.0
        %771 = vmatpush.xpose.msra.mxu0 0.0
        %772 = vmatpush.xpose.msra.mxu0 0.0
        %773 = vmatpush.xpose.msra.mxu0 0.0
        %774 = vmatpush.xpose.msra.mxu0 0.0
        %775 = vmatpush.xpose.msra.mxu0 0.0
        %776 = vmatpush.xpose.msra.mxu0 0.0
        %777 = vmatpush.xpose.msra.mxu0 0.0
        %778 = vmatpush.xpose.msra.mxu0 0.0
        %779 = vmatpush.xpose.msra.mxu0 %v762
        %780 = vmatmul.f32.gmra.mxu0 %v760
        %v781 = vpop.f32.mrf.mxu0
        %v782 = vadd.f32 0.0, %v781
        %783 = vdwg.mxu0
        %v784 = vmul.f32 %v782, 0.35355338
        %v785 = vsel %vm522, %v784, -inf
        %786 = vmax.xlane.f32.xlu0 %v785
        %v787 = vpop.xlane.xlu0 %786
        %v788 = vsub.f32 %v784, %v787
        %v789 = vmul.f32 %v788, 1.442695
        %v790 = vpow.pop %v789
        %v791 = vsel %vm522, %v790, 0.0
        %792 = vadd.xlane.f32.xlu0 %v791
        %v793 = vpop.xlane.xlu0 %792
        %794 = vrot.lane.b32.xlu0 %v520, 104
        %v795 = vpop.permute.xlu0 %794
        %v798 = vsel %vm522, %v790, 0
        %800 = vmatpush.msra.mxu0 0.0
        %801 = vmatpush.msra.mxu0 0.0
        %802 = vmatpush.msra.mxu0 0.0
        %803 = vmatpush.msra.mxu0 0.0
        %804 = vmatpush.msra.mxu0 0.0
        %805 = vmatpush.msra.mxu0 0.0
        %806 = vmatpush.msra.mxu0 0.0
        %807 = vmatpush.msra.mxu0 0.0
        %808 = vmatpush.msra.mxu0 0.0
        %809 = vmatpush.msra.mxu0 0.0
        %810 = vmatpush.msra.mxu0 0.0
        %811 = vmatpush.msra.mxu0 0.0
        %812 = vmatpush.msra.mxu0 0.0
        %813 = vmatpush.msra.mxu0 0.0
        %814 = vmatpush.msra.mxu0 0.0
        %815 = vmatpush.msra.mxu0 %v795
        %816 = vmatmul.f32.gmra.mxu0 %v798
        %v817 = vpop.f32.mrf.mxu0
        %v818 = vadd.f32 0.0, %v817
        %819 = vdwg.mxu0
        %v820 = vrcp.pop %v793
        %v821 = vmul.f32 %v793, %v820
        %v822 = vsub.f32 1.0, %v821
        %v823 = vmul.f32 %v820, %v822
        %v824 = vadd.f32 %v820, %v823
        %vm825 = vweird.f32 %v793
        %vm826 = vweird.f32 %v820
        %vm827 = vmor %vm825, %vm826
        %v828 = vsel %vm827, %v820, %v824
        %v829 = vand.u32 2147483647, %v793
        %vm830 = vcmp.eq.f32.partialorder %v829, 8.507059e+37
        %v831 = vand.u32 %v793, 2147483648
        %v832 = vor.u32 1.1754944e-38, %v831
        %v833 = vsel %vm830, %v832, %v828
        %v834 = vmul.f32 %v818, %v833
        %836 = vrot.lane.b32.xlu0 %v676, 8
        %v837 = vpop.permute.xlu0 %836
        %840 = vrot.lane.b32.xlu0 %v755, 16
        %v841 = vpop.permute.xlu0 %840
        %844 = vrot.lane.b32.xlu0 %v834, 24
        %v845 = vpop.permute.xlu0 %844
        %v847 = vsel %vm522, %v596, %v837
        %vm848 = vcmask 130048
        %v849 = vsel %vm848, %v847, %v841
        %vm850 = vcmask 195584
        %v851 = vsel %vm850, %v849, %v845
        %v852 = vld [vmem:[#allocation13] sm:$0xff]
        %v853 = vld [vmem:[#allocation13 + $0x8] sm:$0xff]
        %v854 = vld [vmem:[#allocation13 + $0x10] sm:$0xff]
        %v855 = vld [vmem:[#allocation13 + $0x18] sm:$0xff]
        %v857 = vsel %vm444, %v851, 0
        %859 = vmatpush.msra.mxu0 0.0
        %860 = vmatpush.msra.mxu0 0.0
        %861 = vmatpush.msra.mxu0 0.0
        %862 = vmatpush.msra.mxu0 0.0
        %863 = vmatpush.msra.mxu0 0.0
        %864 = vmatpush.msra.mxu0 0.0
        %865 = vmatpush.msra.mxu0 0.0
        %866 = vmatpush.msra.mxu0 0.0
        %867 = vmatpush.msra.mxu0 0.0
        %868 = vmatpush.msra.mxu0 0.0
        %869 = vmatpush.msra.mxu0 0.0
        %870 = vmatpush.msra.mxu0 0.0
        %871 = vmatpush.msra.mxu0 %v855
        %872 = vmatpush.msra.mxu0 %v854
        %873 = vmatpush.msra.mxu0 %v853
        %874 = vmatpush.msra.mxu0 %v852
        %875 = vmatmul.f32.gmra.mxu0 %v857
        %v876 = vpop.f32.mrf.mxu0
        %v877 = vadd.f32 0.0, %v876
        %878 = vdwg.mxu0
        %879 = vst.msk [vmem:[%s436] sm:$0xff] %vm444, %v877
        %s880 = sand.u32 %s199, 1
        %s881 = scalar_lea.sflag [#allocation4], %s880
        %s882 = sand.u32 %s199, 1
        %s883 = smul.addr %s882, 8
        %s884 = scalar_lea.vmem [#allocation14], %s883
        // Predicated region
        $region77: #{tpu_custom_call.1} parent=47 // pred_check
          %p885 = pneg %p209
        $region78: #{tpu_custom_call.1} parent=47 // pred_check_branch
          %887 = sbr.rel (%p885) target = $region80
        $region79: #{tpu_custom_call.1} parent=47 // pred_region
          %889 = vsyncadd %s881, 0
          %s890 = smul.addr %s29, 8
          %s891 = scalar_lea.hbm %s7, %s890
          %s893 = sshll.u32 %s884, 4
          %s894 = int_to_ptr.vmem [resolvable:$true] %s893
          %s895 = sshll.u32 %s891, 4
          %s896 = int_to_ptr.hbm [resolvable:$true] %s895
          %898 = dma.vmem_to_hbm [thread:$0]  %s894, 128, %s896, %s881
        $region80: #{tpu_custom_call.1} parent=47 // pred_fallthru
          _
      $region48: #{tpu_custom_call.1} parent=5 // pred_fallthru
        _
      %p899 = scmp.le.s32.totalorder 2, %s24
      // Predicated region
      $region81: #{tpu_custom_call.1} parent=5 // pred_check
        %p900 = pneg %p899
      $region82: #{tpu_custom_call.1} parent=5 // pred_check_branch
        %902 = sbr.rel (%p900) target = $region84
      $region83: #{tpu_custom_call.1} parent=5 // pred_region
        %s903 = ssub.s32 %s24, 2
        // Predicated region
        $region85: #{tpu_custom_call.1} parent=83 // pred_check
          %p904 = pneg %p215
        $region86: #{tpu_custom_call.1} parent=83 // pred_check_branch
          %906 = sbr.rel (%p904) target = $region88
        $region87: #{tpu_custom_call.1} parent=83 // pred_region
          %s907 = sand.u32 %s200, 1
          %s908 = scalar_lea.sflag [#allocation4], %s907
          %s909 = sand.u32 %s200, 1
          %s910 = smul.addr %s909, 8
          %s911 = scalar_lea.vmem [#allocation14], %s910
          %913 = dma.done %s908, 128
        $region88: #{tpu_custom_call.1} parent=83 // pred_fallthru
          _
      $region84: #{tpu_custom_call.1} parent=5 // pred_fallthru
        _
    $region6: #{tpu_custom_call.1} parent=1 // loop_footer
      %s28 = sadd.s32 1, %s24
    $region7: #{tpu_custom_call.1} parent=1 // loop_footer_branch
      %23 = sbr.rel target = $region3
    $region8: #{tpu_custom_call.1} parent=1 // loop_exit
      _
    %914 = vsyncpa [#allocation3], 1
    %s915 = scalar_lea.sflag [#allocation3], 1
    %916 = vsyncpa %s915, 1
    %917 = vsyncpa [#allocation6], 1
    %s918 = scalar_lea.sflag [#allocation6], 1
    %919 = vsyncpa %s918, 1
    %920 = vsyncpa [#allocation9], 1
    %921 = vsyncpa [#allocation12], 1
    %922 = vsyncpa [#allocation4], 1
    %s923 = scalar_lea.sflag [#allocation4], 1
    %924 = vsyncpa %s923, 1

</llo_original>
